<compile_context>
chip_gen: v5e
topology: v5e:2x2
jax: 0.10.0
libtpu: 0.0.40
codegen_flags: <defaults>
</compile_context>

<pallas_src>
import functools

import jax
import jax.numpy as jnp
from jax.experimental import pallas as pl
from jax.experimental.pallas import tpu as pltpu


# ----------------------------- helpers --------------------------------------


def _pick_hw_tile(hw: int, max_tile: int = 2048) -> int:
    """Largest lane-dense (multiple-of-128) divisor of `hw`, capped at max_tile.

    Falls back to the full extent when hw is not a multiple of 128 (full-extent
    blocks are always legal)."""
    if hw % 128 != 0:
        return hw
    t = min(max_tile, hw)
    t -= t % 128
    while t >= 128:
        if hw % t == 0:
            return t
        t -= 128
    return hw


# ----------------------------- kernels --------------------------------------


def _merge_add_kernel(*refs, n_inputs: int, needs_conv: tuple):
    """Fused 1x1-conv (where needed) + bias + sum over all inputs.

    Ref layout: for each input i -> x_ref[, w_ref, b_ref if needs_conv[i]],
    followed by the output ref.  Blocks: x (1, C_i, t_hw); w (Cout, C_i);
    b (Cout, 1); out (1, Cout, t_hw)."""
    o_ref = refs[-1]
    acc = None
    idx = 0
    for i in range(n_inputs):
        x = refs[idx][0]  # (C_i, t_hw)
        idx += 1
        if needs_conv[i]:
            w = refs[idx][...]      # (Cout, C_i) float32
            b = refs[idx + 1][...]  # (Cout, 1)   float32
            idx += 2
            # MXU matmul, f32 accumulation; bias broadcast over lanes.
            y = jnp.dot(w, x.astype(jnp.float32),
                        preferred_element_type=jnp.float32) + b
        else:
            y = x.astype(jnp.float32)
        acc = y if acc is None else acc + y
    o_ref[0] = acc.astype(o_ref.dtype)


def _merge_cat_kernel(*refs, channel_offsets: tuple, channel_sizes: tuple):
    """Concatenate inputs along the channel (sublane) axis with static slices.

    Note: channel offsets may not be 8-aligned; for the tiny channel counts of
    this module the resulting sublane-shifted stores are negligible."""
    o_ref = refs[-1]
    for i, (off, ci) in enumerate(zip(channel_offsets, channel_sizes)):
        o_ref[0, off:off + ci, :] = refs[i][0]


# ----------------------------- wrapper --------------------------------------


def merge_block(tensors, *, policy: str, target_channels: int, params=None):
    """MergeBlock forward.

    tensors: list of (N, C_i, H, W) arrays (same N, H, W).
    policy:  'add' or 'cat'.
    params:  for 'add', a list aligned with `tensors`; entry i is None when
             C_i == target_channels, otherwise (w, b) with
             w: (target_channels, C_i), b: (target_channels,) — 1x1-conv params.
    """
    if policy not in ("add", "cat"):
        raise ValueError(
            "`merge_policy` must be one of: ['add', 'cat'], got {}".format(policy)
        )

    N, _, H, W = tensors[0].shape
    HW = H * W
    t_hw = _pick_hw_tile(HW)
    grid = (N, HW // t_hw)
    dtype = tensors[0].dtype
    compiler_params = pltpu.CompilerParams(
        dimension_semantics=("parallel", "parallel"))

    if policy == "add":
        needs_conv = tuple(int(t.shape[1]) != target_channels for t in tensors)
        kernel_inputs, in_specs = [], []
        for i, t in enumerate(tensors):
            ci = int(t.shape[1])
            kernel_inputs.append(t.reshape(N, ci, HW))
            in_specs.append(pl.BlockSpec((1, ci, t_hw), lambda n, h: (n, 0, h)))
            if needs_conv[i]:
                if params is None or params[i] is None:
                    raise ValueError(
                        "policy='add' requires (w, b) params for input {}".format(i))
                w, b = params[i]
                kernel_inputs.append(jnp.asarray(w, dtype=jnp.float32))
                kernel_inputs.append(
                    jnp.asarray(b, dtype=jnp.float32).reshape(target_channels, 1))
                in_specs.append(
                    pl.BlockSpec((target_channels, ci), lambda n, h: (0, 0)))
                in_specs.append(
                    pl.BlockSpec((target_channels, 1), lambda n, h: (0, 0)))

        kernel = functools.partial(
            _merge_add_kernel, n_inputs=len(tensors), needs_conv=needs_conv)
        out3 = pl.pallas_call(
            kernel,
            out_shape=jax.ShapeDtypeStruct((N, target_channels, HW), dtype),
            grid=grid,
            in_specs=in_specs,
            out_specs=pl.BlockSpec((1, target_channels, t_hw),
                                   lambda n, h: (n, 0, h)),
            compiler_params=compiler_params,
        )(*kernel_inputs)
        return out3.reshape(N, target_channels, H, W)

    # policy == 'cat'
    sizes = tuple(int(t.shape[1]) for t in tensors)
    offsets, off = [], 0
    for c in sizes:
        offsets.append(off)
        off += c
    total_c = off

    kernel = functools.partial(
        _merge_cat_kernel, channel_offsets=tuple(offsets), channel_sizes=sizes)
    in_specs = [pl.BlockSpec((1, c, t_hw), lambda n, h: (n, 0, h)) for c in sizes]
    out3 = pl.pallas_call(
        kernel,
        out_shape=jax.ShapeDtypeStruct((N, total_c, HW), dtype),
        grid=grid,
        in_specs=in_specs,
        out_specs=pl.BlockSpec((1, total_c, t_hw), lambda n, h: (n, 0, h)),
        compiler_params=compiler_params,
    )(*(t.reshape(N, c, HW) for t, c in zip(tensors, sizes)))
    return out3.reshape(N, total_c, H, W)


# ------------------------------ demo / check --------------------------------


if __name__ == "__main__":
    key = jax.random.PRNGKey(0)
    N, H, W = 2, 16, 16
    target_channels = 4

    k1, k2, k3, k4 = jax.random.split(key, 4)
    x0 = jax.random.normal(k1, (N, target_channels, H, W), dtype=jnp.float32)
    x1 = jax.random.normal(k2, (N, 8, H, W), dtype=jnp.float32)  # needs 1x1 conv

    # Deterministic 1x1-conv params for the channel-mismatched tensor.
    w1 = 0.1 * jax.random.normal(k3, (target_channels, 8), dtype=jnp.float32)
    b1 = 0.1 * jax.random.normal(k4, (target_channels,), dtype=jnp.float32)
    params = [None, (w1, b1)]

    # ---- policy='add' ----
    y_add = merge_block(
        [x0, x1], policy="add", target_channels=target_channels, params=params)
    y_add = jax.block_until_ready(y_add)
    ref_add = x0 + (jnp.einsum("oc,nchw->nohw", w1, x1) + b1[None, :, None, None])
    assert y_add.shape == (N, target_channels, H, W)
    assert jnp.allclose(y_add, ref_add, rtol=1e-5, atol=1e-5), "add policy mismatch"

    # ---- policy='cat' ----
    y_cat = merge_block([x0, x1], policy="cat", target_channels=target_channels)
    y_cat = jax.block_until_ready(y_cat)
    ref_cat = jnp.concatenate([x0, x1], axis=1)
    assert y_cat.shape == (N, target_channels + 8, H, W)
    assert jnp.allclose(y_cat, ref_cat), "cat policy mismatch"

    print("KERNEL_OK")
</pallas_src>

<mosaic_0001>
module attributes {stable_mosaic.version = 11 : i64} {
  func.func @_merge_add_kernel(%arg0: i32, %arg1: i32, %arg2: memref<1x4x256xf32, #tpu.memory_space<vmem>>, %arg3: memref<1x8x256xf32, #tpu.memory_space<vmem>>, %arg4: memref<4x8xf32, #tpu.memory_space<vmem>>, %arg5: memref<4x1xf32, #tpu.memory_space<vmem>>, %arg6: memref<1x4x256xf32, #tpu.memory_space<vmem>>) attributes {dimension_semantics = [#tpu.dimension_semantics<parallel>, #tpu.dimension_semantics<parallel>], iteration_bounds = array<i64: 2, 1>, scalar_prefetch = 0 : i64, scratch_operands = 0 : i64, tpu.core_type = #tpu.core_type<tc>, window_params = [{transform_indices = @transform_0, window_bounds = array<i64: 1, 4, 256>}, {transform_indices = @transform_1, window_bounds = array<i64: 1, 8, 256>}, {pipeline_mode = #tpu.pipeline_mode<synchronous>, transform_indices = @transform_2, window_bounds = array<i64: 4, 8>}, {pipeline_mode = #tpu.pipeline_mode<synchronous>, transform_indices = @transform_3, window_bounds = array<i64: 4, 1>}, {transform_indices = @transform_4, window_bounds = array<i64: 1, 4, 256>}]} {
    %c0 = arith.constant 0 : index
    %c0_0 = arith.constant 0 : index
    %c0_1 = arith.constant 0 : index
    %0 = vector.load %arg2[%c0, %c0_0, %c0_1] : memref<1x4x256xf32, #tpu.memory_space<vmem>>, vector<1x4x256xf32>
    %1 = vector.shape_cast %0 : vector<1x4x256xf32> to vector<4x256xf32>
    %c0_2 = arith.constant 0 : index
    %c0_3 = arith.constant 0 : index
    %c0_4 = arith.constant 0 : index
    %2 = vector.load %arg3[%c0_2, %c0_3, %c0_4] : memref<1x8x256xf32, #tpu.memory_space<vmem>>, vector<1x8x256xf32>
    %3 = vector.shape_cast %2 : vector<1x8x256xf32> to vector<8x256xf32>
    %c0_5 = arith.constant 0 : index
    %c0_6 = arith.constant 0 : index
    %4 = vector.load %arg4[%c0_5, %c0_6] : memref<4x8xf32, #tpu.memory_space<vmem>>, vector<4x8xf32>
    %c0_7 = arith.constant 0 : index
    %c0_8 = arith.constant 0 : index
    %5 = vector.load %arg5[%c0_7, %c0_8] : memref<4x1xf32, #tpu.memory_space<vmem>>, vector<4x1xf32>
    %cst = arith.constant dense<0.000000e+00> : vector<4x256xf32>
    %6 = tpu.matmul %4, %3, %cst {dimension_numbers = #tpu.dot_dimension_numbers<[1], [0], [0], [1], [0, 0, 1, 1], [], []>} : vector<4x8xf32>, vector<8x256xf32>, vector<4x256xf32> -> vector<4x256xf32>
    %7 = vector.broadcast %5 : vector<4x1xf32> to vector<4x256xf32>
    %8 = arith.addf %6, %7 : vector<4x256xf32>
    %9 = arith.addf %1, %8 : vector<4x256xf32>
    %c0_9 = arith.constant 0 : index
    %c0_10 = arith.constant 0 : index
    %c0_11 = arith.constant 0 : index
    %10 = vector.load %arg6[%c0_9, %c0_10, %c0_11] : memref<1x4x256xf32, #tpu.memory_space<vmem>>, vector<1x4x256xf32>
    %11 = vector.shape_cast %10 : vector<1x4x256xf32> to vector<4x256xf32>
    %12 = vector.shape_cast %9 : vector<4x256xf32> to vector<1x4x256xf32>
    tpu.vector_store %arg6[%c0_9, %c0_10, %c0_11], %12 {strides = array<i32>} : memref<1x4x256xf32, #tpu.memory_space<vmem>>, vector<1x4x256xf32>,
    return
  }
  func.func @transform_0(%arg0: i32, %arg1: i32) -> (i32, i32, i32) {
    %c0_i32 = arith.constant 0 : i32
    %c0_i32_0 = arith.constant 0 : i32
    return %arg0, %c0_i32, %arg1 : i32, i32, i32
  }
  func.func @transform_1(%arg0: i32, %arg1: i32) -> (i32, i32, i32) {
    %c0_i32 = arith.constant 0 : i32
    %c0_i32_0 = arith.constant 0 : i32
    return %arg0, %c0_i32, %arg1 : i32, i32, i32
  }
  func.func @transform_2(%arg0: i32, %arg1: i32) -> (i32, i32) {
    %c0_i32 = arith.constant 0 : i32
    %c0_i32_0 = arith.constant 0 : i32
    %c0_i32_1 = arith.constant 0 : i32
    return %c0_i32, %c0_i32_0 : i32, i32
  }
  func.func @transform_3(%arg0: i32, %arg1: i32) -> (i32, i32) {
    %c0_i32 = arith.constant 0 : i32
    %c0_i32_0 = arith.constant 0 : i32
    %c0_i32_1 = arith.constant 0 : i32
    return %c0_i32, %c0_i32_0 : i32, i32
  }
  func.func @transform_4(%arg0: i32, %arg1: i32) -> (i32, i32, i32) {
    %c0_i32 = arith.constant 0 : i32
    %c0_i32_0 = arith.constant 0 : i32
    return %arg0, %c0_i32, %arg1 : i32, i32, i32
  }
}

</mosaic_0001>

<llo_original>
// kernel: tpu_custom_call.1
$region0: #{tpu_custom_call.1}
  #allocation0 [shape = 'u32[]', space=smem, size = 0x4, offset = 0x4, fixed_abs, tag = 'smem constant byte address 0x4 - core index']
  #allocation1 [shape = 'u32[72,128]{1,0:T(1,128)}', space=vmem, size = 0x9000, scoped, tag = 'internal scratch']
  %s0 = inlined_call_operand.hbm [shape: f32[2,4,256], index: 0, kind: input, shape index: {}]
  %s1 = inlined_call_operand.hbm [shape: f32[2,8,256], index: 1, kind: input, shape index: {}]
  %s2 = inlined_call_operand.vmem [shape: f32[4,8], index: 2, kind: input, shape index: {}]
  %s3 = inlined_call_operand.vmem [shape: f32[4,1], index: 3, kind: input, shape index: {}]
  %s4 = inlined_call_operand.hbm [shape: f32[2,4,256], index: 4, kind: output, shape index: {}]
  %s5 = sld [smem:[#allocation0]]
  $region57: #{tpu_custom_call.1} parent=0
    _
  %s7 = ssub.s32 1, %s5
  %s8 = scalar_select 0, %s7, %s5
  $region1: #{tpu_custom_call.1} parent=0
    #allocation2 [shape = 'u8[8192]{0}', space=vmem, size = 0x2000, scoped, tag = 'input window, operand 0']
    #allocation3 [shape = 's32[2]{0}', space=sflag, size = 0x8, scoped, tag = 'scoped memory for tpu_custom_call.1']
    #allocation4 [shape = 's32[2]{0}', space=sflag, size = 0x8, scoped, tag = 'scoped memory for tpu_custom_call.1']
    #allocation5 [shape = 'u8[16384]{0}', space=vmem, size = 0x4000, scoped, tag = 'input window, operand 1']
    #allocation6 [shape = 's32[2]{0}', space=sflag, size = 0x8, scoped, tag = 'scoped memory for tpu_custom_call.1']
    #allocation7 [shape = 'u8[8192]{0}', space=vmem, size = 0x2000, scoped, tag = 'output window, operand 0']
    %9 = vsyncpa [#allocation3], 0
    %s10 = scalar_lea.sflag [#allocation3], 1
    %11 = vsyncpa %s10, 0
    %12 = vsyncpa [#allocation6], 0
    %s13 = scalar_lea.sflag [#allocation6], 1
    %14 = vsyncpa %s13, 0
    %15 = vsyncpa [#allocation4], 0
    %s16 = scalar_lea.sflag [#allocation4], 1
    %17 = vsyncpa %s16, 0
    loop: start=0, step=1, limit=4
    $region2: #{tpu_custom_call.1} parent=1 // loop_pre_header
      _
    $region3: #{tpu_custom_call.1} parent=1 // loop_header
      %s19 = sphi 0, %s23
      %p20 = scmp.ge.s32.totalorder %s19, 4
      %s26 = sphi 0, %s38
      %s27 = sphi 0, %s34
      %s28 = sphi 0, %s26
      %s29 = sphi 0, %s27
      %s30 = sphi 0, %s28
      %s31 = sphi 0, %s29
      %s43 = sphi 0, %s45
      %s46 = sphi 0, %s43
      %s47 = sphi 0, %s46
      %s63 = sphi 0, %s47
      %s71 = sphi 0, %s73
      %s74 = sphi 0, %s71
      %s75 = sphi 0, %s74
      %s91 = sphi 0, %s75
      %s95 = sphi 0, %s95
      %s97 = sphi 0, %s95
      %s98 = sphi 0, %s97
      %s112 = sphi 0, %s98
      %s116 = sphi 0, %s116
      %s118 = sphi 0, %s116
      %s119 = sphi 0, %s118
      %s133 = sphi 0, %s119
      %s141 = sphi 0, %s143
      %s144 = sphi 0, %s141
      %s145 = sphi 0, %s144
      %s161 = sphi 0, %s145
    $region4: #{tpu_custom_call.1} parent=1 // loop_header_branch
      %22 = sbr.rel (%p20) target = $region8
    $region5: #{tpu_custom_call.1} parent=1 // loop_body
      %s24 = ssub.s32 %s19, 1
      %s25 = ssub.s32 %s19, 2
      %s32 = sadd.s32 1, %s27
      %p33 = scmp.ge.s32.totalorder %s32, 1
      %s34 = scalar_select %p33, 0, %s32
      %s35 = sadd.s32 1, %s26
      %s36 = scalar_select %p33, %s35, %s26
      %p37 = scmp.ge.s32.totalorder %s36, 2
      %s38 = scalar_select %p37, 0, %s36
      %s39 = ssub.s32 %s26, %s38
      %s40 = ssub.s32 %s27, %s34
      %s41 = sor.u32 %s39, %s40
      %p42 = scmp.eq.s32.totalorder %s41, 0
      %s44 = sadd.s32 %s43, 1
      %s45 = scalar_select %p42, %s43, %s44
      %p48 = pneg %p42
      %p49 = scmp.eq.s32.totalorder %s19, 1
      %p50 = por %p48, %p49
      %p51 = scmp.ne.s32.totalorder %s43, %s46
      %p52 = scmp.eq.s32.totalorder %s19, 0
      %p53 = por %p51, %p52
      %p54 = scmp.ne.s32.totalorder %s43, %s46
      %p55 = scmp.eq.s32.totalorder %s24, 1
      %p56 = por %p54, %p55
      %p57 = scmp.ne.s32.totalorder %s46, %s47
      %p58 = scmp.eq.s32.totalorder %s24, 0
      %p59 = por %p57, %p58
      %p60 = scmp.ne.s32.totalorder %s46, %s47
      %p61 = scmp.eq.s32.totalorder %s25, 1
      %p62 = por %p60, %p61
      %p64 = scmp.ne.s32.totalorder %s47, %s63
      %p65 = scmp.eq.s32.totalorder %s25, 0
      %p66 = por %p64, %p65
      %s67 = ssub.s32 %s26, %s38
      %s68 = ssub.s32 %s27, %s34
      %s69 = sor.u32 %s67, %s68
      %p70 = scmp.eq.s32.totalorder %s69, 0
      %s72 = sadd.s32 %s71, 1
      %s73 = scalar_select %p70, %s71, %s72
      %p76 = pneg %p70
      %p77 = scmp.eq.s32.totalorder %s19, 1
      %p78 = por %p76, %p77
      %p79 = scmp.ne.s32.totalorder %s71, %s74
      %p80 = scmp.eq.s32.totalorder %s19, 0
      %p81 = por %p79, %p80
      %p82 = scmp.ne.s32.totalorder %s71, %s74
      %p83 = scmp.eq.s32.totalorder %s24, 1
      %p84 = por %p82, %p83
      %p85 = scmp.ne.s32.totalorder %s74, %s75
      %p86 = scmp.eq.s32.totalorder %s24, 0
      %p87 = por %p85, %p86
      %p88 = scmp.ne.s32.totalorder %s74, %s75
      %p89 = scmp.eq.s32.totalorder %s25, 1
      %p90 = por %p88, %p89
      %p92 = scmp.ne.s32.totalorder %s75, %s91
      %p93 = scmp.eq.s32.totalorder %s25, 0
      %p94 = por %p92, %p93
      %s96 = sadd.s32 %s95, 1
      %p99 = scmp.eq.s32.totalorder %s19, 1
      %p100 = scmp.ne.s32.totalorder %s95, %s97
      %p101 = scmp.eq.s32.totalorder %s19, 0
      %p102 = por %p100, %p101
      %p103 = scmp.ne.s32.totalorder %s95, %s97
      %p104 = scmp.eq.s32.totalorder %s24, 1
      %p105 = por %p103, %p104
      %p106 = scmp.ne.s32.totalorder %s97, %s98
      %p107 = scmp.eq.s32.totalorder %s24, 0
      %p108 = por %p106, %p107
      %p109 = scmp.ne.s32.totalorder %s97, %s98
      %p110 = scmp.eq.s32.totalorder %s25, 1
      %p111 = por %p109, %p110
      %p113 = scmp.ne.s32.totalorder %s98, %s112
      %p114 = scmp.eq.s32.totalorder %s25, 0
      %p115 = por %p113, %p114
      %s117 = sadd.s32 %s116, 1
      %p120 = scmp.eq.s32.totalorder %s19, 1
      %p121 = scmp.ne.s32.totalorder %s116, %s118
      %p122 = scmp.eq.s32.totalorder %s19, 0
      %p123 = por %p121, %p122
      %p124 = scmp.ne.s32.totalorder %s116, %s118
      %p125 = scmp.eq.s32.totalorder %s24, 1
      %p126 = por %p124, %p125
      %p127 = scmp.ne.s32.totalorder %s118, %s119
      %p128 = scmp.eq.s32.totalorder %s24, 0
      %p129 = por %p127, %p128
      %p130 = scmp.ne.s32.totalorder %s118, %s119
      %p131 = scmp.eq.s32.totalorder %s25, 1
      %p132 = por %p130, %p131
      %p134 = scmp.ne.s32.totalorder %s119, %s133
      %p135 = scmp.eq.s32.totalorder %s25, 0
      %p136 = por %p134, %p135
      %s137 = ssub.s32 %s26, %s38
      %s138 = ssub.s32 %s27, %s34
      %s139 = sor.u32 %s137, %s138
      %p140 = scmp.eq.s32.totalorder %s139, 0
      %s142 = sadd.s32 %s141, 1
      %s143 = scalar_select %p140, %s141, %s142
      %p146 = pneg %p140
      %p147 = scmp.eq.s32.totalorder %s19, 1
      %p148 = por %p146, %p147
      %p149 = scmp.ne.s32.totalorder %s141, %s144
      %p150 = scmp.eq.s32.totalorder %s19, 0
      %p151 = por %p149, %p150
      %p152 = scmp.ne.s32.totalorder %s141, %s144
      %p153 = scmp.eq.s32.totalorder %s24, 1
      %p154 = por %p152, %p153
      %p155 = scmp.ne.s32.totalorder %s144, %s145
      %p156 = scmp.eq.s32.totalorder %s24, 0
      %p157 = por %p155, %p156
      %p158 = scmp.ne.s32.totalorder %s144, %s145
      %p159 = scmp.eq.s32.totalorder %s25, 1
      %p160 = por %p158, %p159
      %p162 = scmp.ne.s32.totalorder %s145, %s161
      %p163 = scmp.eq.s32.totalorder %s25, 0
      %p164 = por %p162, %p163
      %p165 = scmp.le.s32.totalorder 1, %s19
      %p166 = scmp.lt.s32.totalorder %s19, 3
      %p167 = pnand %p165, %p166
      %p168 = pneg %p167
      // Predicated region
      $region9: #{tpu_custom_call.1} parent=5 // pred_check
        _
      $region10: #{tpu_custom_call.1} parent=5 // pred_check_branch
        %170 = sbr.rel (%p167) target = $region12
      $region11: #{tpu_custom_call.1} parent=5 // pred_region
        %s171 = ssub.s32 %s19, 1
        // Predicated region
        $region13: #{tpu_custom_call.1} parent=11 // pred_check
          %p172 = pneg %p108
        $region14: #{tpu_custom_call.1} parent=11 // pred_check_branch
          %174 = sbr.rel (%p172) target = $region16
        $region15: #{tpu_custom_call.1} parent=11 // pred_region
          _
        $region16: #{tpu_custom_call.1} parent=11 // pred_fallthru
          _
        // Predicated region
        $region17: #{tpu_custom_call.1} parent=11 // pred_check
          %p175 = pneg %p129
        $region18: #{tpu_custom_call.1} parent=11 // pred_check_branch
          %177 = sbr.rel (%p175) target = $region20
        $region19: #{tpu_custom_call.1} parent=11 // pred_region
          _
        $region20: #{tpu_custom_call.1} parent=11 // pred_fallthru
          _
      $region12: #{tpu_custom_call.1} parent=5 // pred_fallthru
        _
      %p178 = scmp.lt.s32.totalorder %s19, 2
      // Predicated region
      $region21: #{tpu_custom_call.1} parent=5 // pred_check
        %p179 = pneg %p178
      $region22: #{tpu_custom_call.1} parent=5 // pred_check_branch
        %181 = sbr.rel (%p179) target = $region24
      $region23: #{tpu_custom_call.1} parent=5 // pred_region
        // Predicated region
        $region25: #{tpu_custom_call.1} parent=23 // pred_check
          %p182 = pneg %p53
        $region26: #{tpu_custom_call.1} parent=23 // pred_check_branch
          %184 = sbr.rel (%p182) target = $region28
        $region27: #{tpu_custom_call.1} parent=23 // pred_region
          %s185 = sand.u32 %s43, 1
          %s186 = scalar_lea.sflag [#allocation3], %s185
          %s187 = sand.u32 %s43, 1
          %s188 = smul.addr %s187, 8
          %s189 = scalar_lea.vmem [#allocation2], %s188
          %s190 = smul.u32 2, %s27
          %192 = vsyncadd %s186, 0
          %s193 = smul.addr %s26, 2
          %s194 = sadd.s32 %s190, %s193
          %s195 = smul.addr %s194, 4
          %s196 = scalar_lea.hbm %s0, %s195
          %s198 = sshll.u32 %s196, 4
          %s199 = int_to_ptr.hbm [resolvable:$true] %s198
          %s200 = sshll.u32 %s189, 4
          %s201 = int_to_ptr.vmem [resolvable:$true] %s200
          %203 = dma.hbm_to_vmem [thread:$0]  %s199, 128, %s201, %s186
        $region28: #{tpu_custom_call.1} parent=23 // pred_fallthru
          _
        // Predicated region
        $region29: #{tpu_custom_call.1} parent=23 // pred_check
          %p204 = pneg %p81
        $region30: #{tpu_custom_call.1} parent=23 // pred_check_branch
          %206 = sbr.rel (%p204) target = $region32
        $region31: #{tpu_custom_call.1} parent=23 // pred_region
          %s207 = sand.u32 %s71, 1
          %s208 = scalar_lea.sflag [#allocation6], %s207
          %s209 = sand.u32 %s71, 1
          %s210 = smul.addr %s209, 16
          %s211 = scalar_lea.vmem [#allocation5], %s210
          %s212 = smul.u32 2, %s27
          %214 = vsyncadd %s208, 0
          %s215 = smul.addr %s26, 2
          %s216 = sadd.s32 %s212, %s215
          %s217 = smul.addr %s216, 8
          %s218 = scalar_lea.hbm %s1, %s217
          %s220 = sshll.u32 %s218, 4
          %s221 = int_to_ptr.hbm [resolvable:$true] %s220
          %s222 = sshll.u32 %s211, 4
          %s223 = int_to_ptr.vmem [resolvable:$true] %s222
          %225 = dma.hbm_to_vmem [thread:$0]  %s221, 256, %s223, %s208
        $region32: #{tpu_custom_call.1} parent=23 // pred_fallthru
          _
      $region24: #{tpu_custom_call.1} parent=5 // pred_fallthru
        _
      %p226 = scmp.le.s32.totalorder 1, %s19
      %p227 = scmp.lt.s32.totalorder %s19, 3
      %p228 = pnand %p226, %p227
      %p229 = pneg %p228
      // Predicated region
      $region33: #{tpu_custom_call.1} parent=5 // pred_check
        _
      $region34: #{tpu_custom_call.1} parent=5 // pred_check_branch
        %231 = sbr.rel (%p228) target = $region36
      $region35: #{tpu_custom_call.1} parent=5 // pred_region
        %s232 = ssub.s32 %s19, 1
        %s233 = sand.u32 %s46, 1
        %s234 = scalar_lea.sflag [#allocation3], %s233
        %s235 = sand.u32 %s46, 1
        %s236 = smul.addr %s235, 8
        %s237 = scalar_lea.vmem [#allocation2], %s236
        // Predicated region
        $region37: #{tpu_custom_call.1} parent=35 // pred_check
          %p238 = pneg %p59
        $region38: #{tpu_custom_call.1} parent=35 // pred_check_branch
          %240 = sbr.rel (%p238) target = $region40
        $region39: #{tpu_custom_call.1} parent=35 // pred_region
          %242 = dma.done %s234, 128
        $region40: #{tpu_custom_call.1} parent=35 // pred_fallthru
          _
        %s243 = sand.u32 %s74, 1
        %s244 = scalar_lea.sflag [#allocation6], %s243
        %s245 = sand.u32 %s74, 1
        %s246 = smul.addr %s245, 16
        %s247 = scalar_lea.vmem [#allocation5], %s246
        // Predicated region
        $region41: #{tpu_custom_call.1} parent=35 // pred_check
          %p248 = pneg %p87
        $region42: #{tpu_custom_call.1} parent=35 // pred_check_branch
          %250 = sbr.rel (%p248) target = $region44
        $region43: #{tpu_custom_call.1} parent=35 // pred_region
          %252 = dma.done %s244, 256
        $region44: #{tpu_custom_call.1} parent=35 // pred_fallthru
          _
        %s253 = sand.u32 %s46, 1
        %s254 = scalar_lea.sflag [#allocation3], %s253
        %s255 = sand.u32 %s46, 1
        %s256 = smul.addr %s255, 8
        %s257 = scalar_lea.vmem [#allocation2], %s256
        %p258 = pneg %p59
        %p259 = pneg %p56
        %s260 = sand.u32 %s74, 1
        %s261 = scalar_lea.sflag [#allocation6], %s260
        %s262 = sand.u32 %s74, 1
        %s263 = smul.addr %s262, 16
        %s264 = scalar_lea.vmem [#allocation5], %s263
        %p265 = pneg %p87
        %p266 = pneg %p84
        %p267 = pneg %p108
        %p268 = pneg %p105
        %p269 = pneg %p129
        %p270 = pneg %p126
        %p271 = pneg %p157
        %p272 = pneg %p154
        %s273 = sand.u32 %s144, 1
        %s274 = scalar_lea.sflag [#allocation4], %s273
        %s275 = sand.u32 %s144, 1
        %s276 = smul.addr %s275, 8
        %s277 = scalar_lea.vmem [#allocation7], %s276
        %s278 = smul.u32 2, %s29
        %s279 = smul.u32 2, %s29
        %s280 = smul.u32 2, %s29
        %v281 = vld [vmem:[%s237] sm:$0xff]
        %v282 = vld [vmem:[%s247] sm:$0xff]
        %v283 = vld [vmem:[%s247 + $0x8] sm:$0xff]
        %v284 = vld [vmem:[%s2] sm:$0xf]
        %v285 = vld [vmem:[%s3] sm:$0xf]
        %287 = vset.pattern.permute.xlu0 0
        %288 = vperm.xlu0 %287, %v285
        %v289 = vpop.permute.xlu0 %288
        %vm291 = vcmask 64512
        %v293 = vsel %vm291, %v284, 0
        %295 = vmatpush.msra.mxu0 0.0
        %296 = vmatpush.msra.mxu0 0.0
        %297 = vmatpush.msra.mxu0 0.0
        %298 = vmatpush.msra.mxu0 0.0
        %299 = vmatpush.msra.mxu0 0.0
        %300 = vmatpush.msra.mxu0 0.0
        %301 = vmatpush.msra.mxu0 0.0
        %302 = vmatpush.msra.mxu0 0.0
        %303 = vmatpush.msra.mxu0 0.0
        %304 = vmatpush.msra.mxu0 0.0
        %305 = vmatpush.msra.mxu0 0.0
        %306 = vmatpush.msra.mxu0 0.0
        %307 = vmatpush.msra.mxu0 0.0
        %308 = vmatpush.msra.mxu0 0.0
        %309 = vmatpush.msra.mxu0 0.0
        %310 = vmatpush.msra.mxu0 %v282
        %311 = vmatmul.f32.gmra.mxu0 %v293
        %v312 = vpop.f32.mrf.mxu0
        %v313 = vadd.f32 %v289, %v312
        %314 = vdwg.mxu0
        %315 = vmatpush.msra.mxu0 0.0
        %316 = vmatpush.msra.mxu0 0.0
        %317 = vmatpush.msra.mxu0 0.0
        %318 = vmatpush.msra.mxu0 0.0
        %319 = vmatpush.msra.mxu0 0.0
        %320 = vmatpush.msra.mxu0 0.0
        %321 = vmatpush.msra.mxu0 0.0
        %322 = vmatpush.msra.mxu0 0.0
        %323 = vmatpush.msra.mxu0 0.0
        %324 = vmatpush.msra.mxu0 0.0
        %325 = vmatpush.msra.mxu0 0.0
        %326 = vmatpush.msra.mxu0 0.0
        %327 = vmatpush.msra.mxu0 0.0
        %328 = vmatpush.msra.mxu0 0.0
        %329 = vmatpush.msra.mxu0 0.0
        %330 = vmatpush.msra.mxu0 %v283
        %331 = vmatmul.f32.gmra.mxu0 %v293
        %v332 = vpop.f32.mrf.mxu0
        %v333 = vadd.f32 %v289, %v332
        %334 = vdwg.mxu0
        %v337 = vrot.slane %v333, 4
        %vm338 = vcmask 1043456
        %v339 = vsel %vm338, %v313, %v337
        %v341 = vadd.f32 %v281, %v339
        %342 = vst [vmem:[%s277] sm:$0xff] %v341
        %s343 = sand.u32 %s144, 1
        %s344 = scalar_lea.sflag [#allocation4], %s343
        %s345 = sand.u32 %s144, 1
        %s346 = smul.addr %s345, 8
        %s347 = scalar_lea.vmem [#allocation7], %s346
        // Predicated region
        $region45: #{tpu_custom_call.1} parent=35 // pred_check
          %p348 = pneg %p154
        $region46: #{tpu_custom_call.1} parent=35 // pred_check_branch
          %350 = sbr.rel (%p348) target = $region48
        $region47: #{tpu_custom_call.1} parent=35 // pred_region
          %s351 = smul.u32 2, %s29
          %353 = vsyncadd %s344, 0
          %s354 = smul.addr %s28, 2
          %s355 = sadd.s32 %s351, %s354
          %s356 = smul.addr %s355, 4
          %s357 = scalar_lea.hbm %s4, %s356
          %s359 = sshll.u32 %s347, 4
          %s360 = int_to_ptr.vmem [resolvable:$true] %s359
          %s361 = sshll.u32 %s357, 4
          %s362 = int_to_ptr.hbm [resolvable:$true] %s361
          %364 = dma.vmem_to_hbm [thread:$0]  %s360, 128, %s362, %s344
        $region48: #{tpu_custom_call.1} parent=35 // pred_fallthru
          _
      $region36: #{tpu_custom_call.1} parent=5 // pred_fallthru
        _
      %p365 = scmp.le.s32.totalorder 2, %s19
      // Predicated region
      $region49: #{tpu_custom_call.1} parent=5 // pred_check
        %p366 = pneg %p365
      $region50: #{tpu_custom_call.1} parent=5 // pred_check_branch
        %368 = sbr.rel (%p366) target = $region52
      $region51: #{tpu_custom_call.1} parent=5 // pred_region
        %s369 = ssub.s32 %s19, 2
        // Predicated region
        $region53: #{tpu_custom_call.1} parent=51 // pred_check
          %p370 = pneg %p160
        $region54: #{tpu_custom_call.1} parent=51 // pred_check_branch
          %372 = sbr.rel (%p370) target = $region56
        $region55: #{tpu_custom_call.1} parent=51 // pred_region
          %s373 = sand.u32 %s145, 1
          %s374 = scalar_lea.sflag [#allocation4], %s373
          %s375 = sand.u32 %s145, 1
          %s376 = smul.addr %s375, 8
          %s377 = scalar_lea.vmem [#allocation7], %s376
          %379 = dma.done %s374, 128
        $region56: #{tpu_custom_call.1} parent=51 // pred_fallthru
          _
      $region52: #{tpu_custom_call.1} parent=5 // pred_fallthru
        _
    $region6: #{tpu_custom_call.1} parent=1 // loop_footer
      %s23 = sadd.s32 1, %s19
    $region7: #{tpu_custom_call.1} parent=1 // loop_footer_branch
      %18 = sbr.rel target = $region3
    $region8: #{tpu_custom_call.1} parent=1 // loop_exit
      _
    %380 = vsyncpa [#allocation3], 1
    %s381 = scalar_lea.sflag [#allocation3], 1
    %382 = vsyncpa %s381, 1
    %383 = vsyncpa [#allocation6], 1
    %s384 = scalar_lea.sflag [#allocation6], 1
    %385 = vsyncpa %s384, 1
    %386 = vsyncpa [#allocation4], 1
    %s387 = scalar_lea.sflag [#allocation4], 1
    %388 = vsyncpa %s387, 1

</llo_original>
